<compile_context>
chip_gen: v7x
topology: tpu7x:2x2x1
jax: 0.10.0
libtpu: 0.0.40
codegen_flags: <defaults>
</compile_context>

<pallas_src>
import math
import jax
import jax.numpy as jnp
from jax.experimental import pallas as pl
from jax.experimental.pallas import tpu as pltpu


# ---------------------------------------------------------------------------
# Parameter construction (mirrors AUTOCODER_array.__init__ layer sizing).
# Deterministic synthetic init (PyTorch-Linear-style uniform bounds).
# ---------------------------------------------------------------------------
def build_params(key, vect_length, num_layer, code_length):
    ds = (vect_length / code_length) ** (1.0 / num_layer)

    enc_dims = []
    for i in range(num_layer - 1):
        enc_dims.append((int(vect_length // ds ** i),
                         int(vect_length // ds ** (i + 1))))
    enc_dims.append((int(vect_length // ds ** (num_layer - 1)), code_length))

    dec_dims = []
    for i in range(num_layer - 1):
        dec_dims.append((int(code_length * ds ** i),
                         int(code_length * ds ** (i + 1))))
    dec_dims.append((int(code_length * ds ** (num_layer - 1)), vect_length))

    def linear(k, fan_in, fan_out):
        kw, kb = jax.random.split(k)
        bound = 1.0 / math.sqrt(fan_in)
        W = jax.random.uniform(kw, (fan_in, fan_out), jnp.float32, -bound, bound)
        b = jax.random.uniform(kb, (1, fan_out), jnp.float32, -bound, bound)
        return W, b

    keys = jax.random.split(key, len(enc_dims) + len(dec_dims) + 2)
    ki = 0
    params = {"enc": [], "dec": []}
    for (fi, fo) in enc_dims:
        params["enc"].append(linear(keys[ki], fi, fo)); ki += 1
    params["enc_all"] = linear(keys[ki], code_length * 3, code_length); ki += 1
    params["dec_all"] = linear(keys[ki], code_length, code_length * 3); ki += 1
    for (fi, fo) in dec_dims:
        params["dec"].append(linear(keys[ki], fi, fo)); ki += 1
    return params


def _round_up(n, m):
    return ((n + m - 1) // m) * m


# ---------------------------------------------------------------------------
# Fused Pallas kernel: the entire coder=2 forward as one MLP on (tb, 3V).
# ---------------------------------------------------------------------------
def make_autocoder_forward(params, code_length, tb=512):
    """Returns forward(x: (B, 3, V) f32) -> (B, 3, V) f32."""

    def block_diag3(W):
        # Shared layer applied independently to the 3 coordinate planes
        # == one block-diagonal matmul on the interleaved feature axis.
        return jnp.kron(jnp.eye(3, dtype=W.dtype), W)

    def tile3(b):
        return jnp.tile(b, (1, 3))

    # Fused layer list: (W, b, relu_after), all weights in (in, out) layout.
    layers = []
    for (W, b) in params["enc"]:
        # ReLU after every encoder linear: intermediate ones from the encoder
        # itself, the last one from encoder_all's leading nn.ReLU().
        layers.append((block_diag3(W), tile3(b), True))
    wea, bea = params["enc_all"]
    layers.append((wea, bea, False))            # Linear(3C, C)
    wda, bda = params["dec_all"]
    layers.append((wda, bda, True))             # Linear(C, 3C) -> ReLU
    n_dec = len(params["dec"])
    for i, (W, b) in enumerate(params["dec"]):
        layers.append((block_diag3(W), tile3(b), i < n_dec - 1))

    relu_flags = tuple(r for (_, _, r) in layers)
    flat_w = []
    for (W, b, _) in layers:
        flat_w += [W, b]

    def kernel(*refs):
        x_ref = refs[0]             # (tb, 3V)  activation tile
        o_ref = refs[-1]            # (tb, 3V)
        w = refs[1:-1]              # alternating W, b (VMEM-resident)
        h = x_ref[...]
        for li, relu in enumerate(relu_flags):
            W = w[2 * li][...]
            b = w[2 * li + 1][...]
            h = jnp.dot(h, W, preferred_element_type=jnp.float32) + b
            if relu:
                h = jnp.maximum(h, 0.0)
        o_ref[...] = h

    def forward(x):
        # x: (B, 3, V) float32 — matches PyTorch (batch, coord, vect_length)
        B, three, V = x.shape
        assert three == 3
        F = 3 * V
        x2 = x.reshape(B, F)                    # free: row-major contiguous

        # big batch tile (>=256 when possible), never larger than the batch
        tb_eff = min(tb, _round_up(B, 8))
        B_pad = _round_up(B, tb_eff)
        if B_pad != B:
            x2 = jnp.pad(x2, ((0, B_pad - B), (0, 0)))

        in_specs = [pl.BlockSpec((tb_eff, F), lambda i: (i, 0))]
        in_specs += [pl.BlockSpec(a.shape, lambda i: (0, 0)) for a in flat_w]

        out2 = pl.pallas_call(
            kernel,
            out_shape=jax.ShapeDtypeStruct((B_pad, F), jnp.float32),
            grid=(B_pad // tb_eff,),
            in_specs=in_specs,
            out_specs=pl.BlockSpec((tb_eff, F), lambda i: (i, 0)),
            compiler_params=pltpu.CompilerParams(
                dimension_semantics=("parallel",)),
        )(x2, *flat_w)
        return out2[:B].reshape(B, 3, V)

    return forward


# ---------------------------------------------------------------------------
# Pure-JAX reference of the PyTorch forward (coder=2, training path).
# ---------------------------------------------------------------------------
def reference_forward(params, x, code_length):
    def mlp(h, layers):
        for li, (W, b) in enumerate(layers):
            h = h @ W + b[0]
            if li < len(layers) - 1:
                h = jnp.maximum(h, 0.0)
        return h

    enc, dec = params["enc"], params["dec"]
    wea, bea = params["enc_all"]
    wda, bda = params["dec_all"]
    C = code_length

    codes = [mlp(x[:, c, :], enc) for c in range(3)]
    code_all = jnp.maximum(jnp.concatenate(codes, axis=-1), 0.0)
    code_out = code_all @ wea + bea[0]
    dall = jnp.maximum(code_out @ wda + bda[0], 0.0)
    decs = [mlp(dall[:, i * C:(i + 1) * C], dec) for i in range(3)]
    return jnp.stack(decs, axis=1)


if __name__ == "__main__":
    vect_length, num_layer, code_length = 64, 2, 16
    batch = 16

    key = jax.random.PRNGKey(0)
    kp, kx = jax.random.split(key)
    params = build_params(kp, vect_length, num_layer, code_length)
    x = jax.random.normal(kx, (batch, 3, vect_length), jnp.float32)

    forward = make_autocoder_forward(params, code_length, tb=512)
    out = jax.block_until_ready(forward(x))

    ref = reference_forward(params, x, code_length)
    assert out.shape == (batch, 3, vect_length)
    assert jnp.allclose(out, ref, atol=1e-4, rtol=1e-4)
    print("KERNEL_OK")
</pallas_src>

<mosaic_0001>
module attributes {stable_mosaic.version = 11 : i64} {
  func.func @kernel(%arg0: i32, %arg1: memref<16x192xf32, #tpu.memory_space<vmem>>, %arg2: memref<192x96xf32, #tpu.memory_space<vmem>>, %arg3: memref<1x96xf32, #tpu.memory_space<vmem>>, %arg4: memref<96x48xf32, #tpu.memory_space<vmem>>, %arg5: memref<1x48xf32, #tpu.memory_space<vmem>>, %arg6: memref<48x16xf32, #tpu.memory_space<vmem>>, %arg7: memref<1x16xf32, #tpu.memory_space<vmem>>, %arg8: memref<16x48xf32, #tpu.memory_space<vmem>>, %arg9: memref<1x48xf32, #tpu.memory_space<vmem>>, %arg10: memref<48x96xf32, #tpu.memory_space<vmem>>, %arg11: memref<1x96xf32, #tpu.memory_space<vmem>>, %arg12: memref<96x192xf32, #tpu.memory_space<vmem>>, %arg13: memref<1x192xf32, #tpu.memory_space<vmem>>, %arg14: memref<16x192xf32, #tpu.memory_space<vmem>>) attributes {dimension_semantics = [#tpu.dimension_semantics<parallel>], iteration_bounds = array<i64: 1>, scalar_prefetch = 0 : i64, scratch_operands = 0 : i64, tpu.core_type = #tpu.core_type<tc>, window_params = [{transform_indices = @transform_0, window_bounds = array<i64: 16, 192>}, {pipeline_mode = #tpu.pipeline_mode<synchronous>, transform_indices = @transform_1, window_bounds = array<i64: 192, 96>}, {pipeline_mode = #tpu.pipeline_mode<synchronous>, transform_indices = @transform_2, window_bounds = array<i64: 1, 96>}, {pipeline_mode = #tpu.pipeline_mode<synchronous>, transform_indices = @transform_3, window_bounds = array<i64: 96, 48>}, {pipeline_mode = #tpu.pipeline_mode<synchronous>, transform_indices = @transform_4, window_bounds = array<i64: 1, 48>}, {pipeline_mode = #tpu.pipeline_mode<synchronous>, transform_indices = @transform_5, window_bounds = array<i64: 48, 16>}, {pipeline_mode = #tpu.pipeline_mode<synchronous>, transform_indices = @transform_6, window_bounds = array<i64: 1, 16>}, {pipeline_mode = #tpu.pipeline_mode<synchronous>, transform_indices = @transform_7, window_bounds = array<i64: 16, 48>}, {pipeline_mode = #tpu.pipeline_mode<synchronous>, transform_indices = @transform_8, window_bounds = array<i64: 1, 48>}, {pipeline_mode = #tpu.pipeline_mode<synchronous>, transform_indices = @transform_9, window_bounds = array<i64: 48, 96>}, {pipeline_mode = #tpu.pipeline_mode<synchronous>, transform_indices = @transform_10, window_bounds = array<i64: 1, 96>}, {pipeline_mode = #tpu.pipeline_mode<synchronous>, transform_indices = @transform_11, window_bounds = array<i64: 96, 192>}, {pipeline_mode = #tpu.pipeline_mode<synchronous>, transform_indices = @transform_12, window_bounds = array<i64: 1, 192>}, {transform_indices = @transform_13, window_bounds = array<i64: 16, 192>}]} {
    %c0 = arith.constant 0 : index
    %c0_0 = arith.constant 0 : index
    %0 = vector.load %arg1[%c0, %c0_0] : memref<16x192xf32, #tpu.memory_space<vmem>>, vector<16x192xf32>
    %c0_1 = arith.constant 0 : index
    %c0_2 = arith.constant 0 : index
    %1 = vector.load %arg2[%c0_1, %c0_2] : memref<192x96xf32, #tpu.memory_space<vmem>>, vector<192x96xf32>
    %c0_3 = arith.constant 0 : index
    %c0_4 = arith.constant 0 : index
    %2 = vector.load %arg3[%c0_3, %c0_4] : memref<1x96xf32, #tpu.memory_space<vmem>>, vector<1x96xf32>
    %cst = arith.constant dense<0.000000e+00> : vector<16x96xf32>
    %3 = tpu.matmul %0, %1, %cst {dimension_numbers = #tpu.dot_dimension_numbers<[1], [0], [0], [1], [0, 0, 1, 1], [], []>} : vector<16x192xf32>, vector<192x96xf32>, vector<16x96xf32> -> vector<16x96xf32>
    %4 = vector.broadcast %2 : vector<1x96xf32> to vector<16x96xf32>
    %5 = arith.addf %3, %4 : vector<16x96xf32>
    %cst_5 = arith.constant 0.000000e+00 : f32
    %6 = vector.broadcast %cst_5 : f32 to vector<16x96xf32>
    %7 = arith.maximumf %5, %6 : vector<16x96xf32>
    %c0_6 = arith.constant 0 : index
    %c0_7 = arith.constant 0 : index
    %8 = vector.load %arg4[%c0_6, %c0_7] : memref<96x48xf32, #tpu.memory_space<vmem>>, vector<96x48xf32>
    %c0_8 = arith.constant 0 : index
    %c0_9 = arith.constant 0 : index
    %9 = vector.load %arg5[%c0_8, %c0_9] : memref<1x48xf32, #tpu.memory_space<vmem>>, vector<1x48xf32>
    %cst_10 = arith.constant dense<0.000000e+00> : vector<16x48xf32>
    %10 = tpu.matmul %7, %8, %cst_10 {dimension_numbers = #tpu.dot_dimension_numbers<[1], [0], [0], [1], [0, 0, 1, 1], [], []>} : vector<16x96xf32>, vector<96x48xf32>, vector<16x48xf32> -> vector<16x48xf32>
    %11 = vector.broadcast %9 : vector<1x48xf32> to vector<16x48xf32>
    %12 = arith.addf %10, %11 : vector<16x48xf32>
    %cst_11 = arith.constant 0.000000e+00 : f32
    %13 = vector.broadcast %cst_11 : f32 to vector<16x48xf32>
    %14 = arith.maximumf %12, %13 : vector<16x48xf32>
    %c0_12 = arith.constant 0 : index
    %c0_13 = arith.constant 0 : index
    %15 = vector.load %arg6[%c0_12, %c0_13] : memref<48x16xf32, #tpu.memory_space<vmem>>, vector<48x16xf32>
    %c0_14 = arith.constant 0 : index
    %c0_15 = arith.constant 0 : index
    %16 = vector.load %arg7[%c0_14, %c0_15] : memref<1x16xf32, #tpu.memory_space<vmem>>, vector<1x16xf32>
    %cst_16 = arith.constant dense<0.000000e+00> : vector<16x16xf32>
    %17 = tpu.matmul %14, %15, %cst_16 {dimension_numbers = #tpu.dot_dimension_numbers<[1], [0], [0], [1], [0, 0, 1, 1], [], []>} : vector<16x48xf32>, vector<48x16xf32>, vector<16x16xf32> -> vector<16x16xf32>
    %18 = vector.broadcast %16 : vector<1x16xf32> to vector<16x16xf32>
    %19 = arith.addf %17, %18 : vector<16x16xf32>
    %c0_17 = arith.constant 0 : index
    %c0_18 = arith.constant 0 : index
    %20 = vector.load %arg8[%c0_17, %c0_18] : memref<16x48xf32, #tpu.memory_space<vmem>>, vector<16x48xf32>
    %c0_19 = arith.constant 0 : index
    %c0_20 = arith.constant 0 : index
    %21 = vector.load %arg9[%c0_19, %c0_20] : memref<1x48xf32, #tpu.memory_space<vmem>>, vector<1x48xf32>
    %cst_21 = arith.constant dense<0.000000e+00> : vector<16x48xf32>
    %22 = tpu.matmul %19, %20, %cst_21 {dimension_numbers = #tpu.dot_dimension_numbers<[1], [0], [0], [1], [0, 0, 1, 1], [], []>} : vector<16x16xf32>, vector<16x48xf32>, vector<16x48xf32> -> vector<16x48xf32>
    %23 = vector.broadcast %21 : vector<1x48xf32> to vector<16x48xf32>
    %24 = arith.addf %22, %23 : vector<16x48xf32>
    %cst_22 = arith.constant 0.000000e+00 : f32
    %25 = vector.broadcast %cst_22 : f32 to vector<16x48xf32>
    %26 = arith.maximumf %24, %25 : vector<16x48xf32>
    %c0_23 = arith.constant 0 : index
    %c0_24 = arith.constant 0 : index
    %27 = vector.load %arg10[%c0_23, %c0_24] : memref<48x96xf32, #tpu.memory_space<vmem>>, vector<48x96xf32>
    %c0_25 = arith.constant 0 : index
    %c0_26 = arith.constant 0 : index
    %28 = vector.load %arg11[%c0_25, %c0_26] : memref<1x96xf32, #tpu.memory_space<vmem>>, vector<1x96xf32>
    %cst_27 = arith.constant dense<0.000000e+00> : vector<16x96xf32>
    %29 = tpu.matmul %26, %27, %cst_27 {dimension_numbers = #tpu.dot_dimension_numbers<[1], [0], [0], [1], [0, 0, 1, 1], [], []>} : vector<16x48xf32>, vector<48x96xf32>, vector<16x96xf32> -> vector<16x96xf32>
    %30 = vector.broadcast %28 : vector<1x96xf32> to vector<16x96xf32>
    %31 = arith.addf %29, %30 : vector<16x96xf32>
    %cst_28 = arith.constant 0.000000e+00 : f32
    %32 = vector.broadcast %cst_28 : f32 to vector<16x96xf32>
    %33 = arith.maximumf %31, %32 : vector<16x96xf32>
    %c0_29 = arith.constant 0 : index
    %c0_30 = arith.constant 0 : index
    %34 = vector.load %arg12[%c0_29, %c0_30] : memref<96x192xf32, #tpu.memory_space<vmem>>, vector<96x192xf32>
    %c0_31 = arith.constant 0 : index
    %c0_32 = arith.constant 0 : index
    %35 = vector.load %arg13[%c0_31, %c0_32] : memref<1x192xf32, #tpu.memory_space<vmem>>, vector<1x192xf32>
    %cst_33 = arith.constant dense<0.000000e+00> : vector<16x192xf32>
    %36 = tpu.matmul %33, %34, %cst_33 {dimension_numbers = #tpu.dot_dimension_numbers<[1], [0], [0], [1], [0, 0, 1, 1], [], []>} : vector<16x96xf32>, vector<96x192xf32>, vector<16x192xf32> -> vector<16x192xf32>
    %37 = vector.broadcast %35 : vector<1x192xf32> to vector<16x192xf32>
    %38 = arith.addf %36, %37 : vector<16x192xf32>
    %c0_34 = arith.constant 0 : index
    %c0_35 = arith.constant 0 : index
    %39 = vector.load %arg14[%c0_34, %c0_35] : memref<16x192xf32, #tpu.memory_space<vmem>>, vector<16x192xf32>
    tpu.vector_store %arg14[%c0_34, %c0_35], %38 {strides = array<i32>} : memref<16x192xf32, #tpu.memory_space<vmem>>, vector<16x192xf32>,
    return
  }
  func.func @transform_0(%arg0: i32) -> (i32, i32) {
    %c0_i32 = arith.constant 0 : i32
    %c0_i32_0 = arith.constant 0 : i32
    return %arg0, %c0_i32 : i32, i32
  }
  func.func @transform_1(%arg0: i32) -> (i32, i32) {
    %c0_i32 = arith.constant 0 : i32
    %c0_i32_0 = arith.constant 0 : i32
    %c0_i32_1 = arith.constant 0 : i32
    return %c0_i32, %c0_i32_0 : i32, i32
  }
  func.func @transform_2(%arg0: i32) -> (i32, i32) {
    %c0_i32 = arith.constant 0 : i32
    %c0_i32_0 = arith.constant 0 : i32
    %c0_i32_1 = arith.constant 0 : i32
    return %c0_i32, %c0_i32_0 : i32, i32
  }
  func.func @transform_3(%arg0: i32) -> (i32, i32) {
    %c0_i32 = arith.constant 0 : i32
    %c0_i32_0 = arith.constant 0 : i32
    %c0_i32_1 = arith.constant 0 : i32
    return %c0_i32, %c0_i32_0 : i32, i32
  }
  func.func @transform_4(%arg0: i32) -> (i32, i32) {
    %c0_i32 = arith.constant 0 : i32
    %c0_i32_0 = arith.constant 0 : i32
    %c0_i32_1 = arith.constant 0 : i32
    return %c0_i32, %c0_i32_0 : i32, i32
  }
  func.func @transform_5(%arg0: i32) -> (i32, i32) {
    %c0_i32 = arith.constant 0 : i32
    %c0_i32_0 = arith.constant 0 : i32
    %c0_i32_1 = arith.constant 0 : i32
    return %c0_i32, %c0_i32_0 : i32, i32
  }
  func.func @transform_6(%arg0: i32) -> (i32, i32) {
    %c0_i32 = arith.constant 0 : i32
    %c0_i32_0 = arith.constant 0 : i32
    %c0_i32_1 = arith.constant 0 : i32
    return %c0_i32, %c0_i32_0 : i32, i32
  }
  func.func @transform_7(%arg0: i32) -> (i32, i32) {
    %c0_i32 = arith.constant 0 : i32
    %c0_i32_0 = arith.constant 0 : i32
    %c0_i32_1 = arith.constant 0 : i32
    return %c0_i32, %c0_i32_0 : i32, i32
  }
  func.func @transform_8(%arg0: i32) -> (i32, i32) {
    %c0_i32 = arith.constant 0 : i32
    %c0_i32_0 = arith.constant 0 : i32
    %c0_i32_1 = arith.constant 0 : i32
    return %c0_i32, %c0_i32_0 : i32, i32
  }
  func.func @transform_9(%arg0: i32) -> (i32, i32) {
    %c0_i32 = arith.constant 0 : i32
    %c0_i32_0 = arith.constant 0 : i32
    %c0_i32_1 = arith.constant 0 : i32
    return %c0_i32, %c0_i32_0 : i32, i32
  }
  func.func @transform_10(%arg0: i32) -> (i32, i32) {
    %c0_i32 = arith.constant 0 : i32
    %c0_i32_0 = arith.constant 0 : i32
    %c0_i32_1 = arith.constant 0 : i32
    return %c0_i32, %c0_i32_0 : i32, i32
  }
  func.func @transform_11(%arg0: i32) -> (i32, i32) {
    %c0_i32 = arith.constant 0 : i32
    %c0_i32_0 = arith.constant 0 : i32
    %c0_i32_1 = arith.constant 0 : i32
    return %c0_i32, %c0_i32_0 : i32, i32
  }
  func.func @transform_12(%arg0: i32) -> (i32, i32) {
    %c0_i32 = arith.constant 0 : i32
    %c0_i32_0 = arith.constant 0 : i32
    %c0_i32_1 = arith.constant 0 : i32
    return %c0_i32, %c0_i32_0 : i32, i32
  }
  func.func @transform_13(%arg0: i32) -> (i32, i32) {
    %c0_i32 = arith.constant 0 : i32
    %c0_i32_0 = arith.constant 0 : i32
    return %arg0, %c0_i32 : i32, i32
  }
}

</mosaic_0001>

<llo_original>
// kernel: tpu_custom_call.1
$region0: #{tpu_custom_call.1}
  #allocation0 [shape = 'u32[]', space=smem, size = 0x4, offset = 0x4, fixed_abs, tag = 'smem constant byte address 0x4 - core index']
  #allocation1 [shape = 'u32[144,128]{1,0:T(1,128)}', space=vmem, size = 0x12000, scoped, tag = 'internal scratch']
  %s0 = inlined_call_operand.hbm [shape: f32[16,192], index: 0, kind: input, shape index: {}]
  %s1 = inlined_call_operand.vmem [shape: f32[192,96], index: 1, kind: input, shape index: {}]
  %s2 = inlined_call_operand.hbm [shape: f32[1,96], index: 2, kind: input, shape index: {}]
  %s3 = inlined_call_operand.vmem [shape: f32[96,48], index: 3, kind: input, shape index: {}]
  %s4 = inlined_call_operand.hbm [shape: f32[1,48], index: 4, kind: input, shape index: {}]
  %s5 = inlined_call_operand.vmem [shape: f32[48,16], index: 5, kind: input, shape index: {}]
  %s6 = inlined_call_operand.hbm [shape: f32[1,16], index: 6, kind: input, shape index: {}]
  %s7 = inlined_call_operand.hbm [shape: f32[16,48], index: 7, kind: input, shape index: {}]
  %s8 = inlined_call_operand.hbm [shape: f32[1,48], index: 8, kind: input, shape index: {}]
  %s9 = inlined_call_operand.vmem [shape: f32[48,96], index: 9, kind: input, shape index: {}]
  %s10 = inlined_call_operand.vmem [shape: f32[1,96], index: 10, kind: input, shape index: {}]
  %s11 = inlined_call_operand.hbm [shape: f32[96,192], index: 11, kind: input, shape index: {}]
  %s12 = inlined_call_operand.vmem [shape: f32[1,192], index: 12, kind: input, shape index: {}]
  %s13 = inlined_call_operand.hbm [shape: f32[16,192], index: 13, kind: output, shape index: {}]
  %s14 = sld [smem:[#allocation0]]
  $region90: #{tpu_custom_call.1} parent=0
    _
  %s16 = ssub.s32 1, %s14
  %s17 = scalar_select 0, %s16, %s14
  $region1: #{tpu_custom_call.1} parent=0
    #allocation2 [shape = 'u8[16384]{0}', space=vmem, size = 0x4000, scoped, tag = 'input window, operand 0, single buffered']
    #allocation3 [shape = 's32[1]{0}', space=sflag, size = 0x4, scoped, tag = 'scoped memory for tpu_custom_call.1']
    #allocation4 [shape = 's32[1]{0}', space=sflag, size = 0x4, scoped, tag = 'scoped memory for tpu_custom_call.1']
    #allocation5 [shape = 'u8[512]{0}', space=vmem, size = 0x400, scoped, tag = 'input window, operand 2, single buffered']
    #allocation6 [shape = 's32[1]{0}', space=sflag, size = 0x4, scoped, tag = 'scoped memory for tpu_custom_call.1']
    #allocation7 [shape = 'u8[512]{0}', space=vmem, size = 0x400, scoped, tag = 'input window, operand 4, single buffered']
    #allocation8 [shape = 'u8[512]{0}', space=vmem, size = 0x400, scoped, tag = 'input window, operand 6, single buffered']
    #allocation9 [shape = 's32[1]{0}', space=sflag, size = 0x4, scoped, tag = 'scoped memory for tpu_custom_call.1']
    #allocation10 [shape = 'u8[8192]{0}', space=vmem, size = 0x2000, scoped, tag = 'input window, operand 7, single buffered']
    #allocation11 [shape = 'u8[512]{0}', space=vmem, size = 0x400, scoped, tag = 'input window, operand 8, single buffered']
    #allocation12 [shape = 's32[1]{0}', space=sflag, size = 0x4, scoped, tag = 'scoped memory for tpu_custom_call.1']
    #allocation13 [shape = 'u8[98304]{0}', space=vmem, size = 0x18000, scoped, tag = 'input window, operand 11, single buffered']
    #allocation14 [shape = 'u8[16384]{0}', space=vmem, size = 0x4000, scoped, tag = 'output window, operand 0, single buffered']
    %18 = vsyncpa [#allocation3], 0
    %19 = vsyncpa [#allocation6], 0
    %20 = vsyncpa [#allocation9], 0
    %21 = vsyncpa [#allocation12], 0
    %22 = vsyncpa [#allocation4], 0
    // Predicated region
    $region2: #{tpu_custom_call.1} parent=1 // pred_check
      _
    $region3: #{tpu_custom_call.1} parent=1 // pred_check_branch
      %24 = sbr.rel (0) target = $region5
    $region4: #{tpu_custom_call.1} parent=1 // pred_region
      %s26 = ssub.s32 512, 512
      %27 = vsyncadd [#allocation3], %s26
      %s28 = sshll.u32 [#allocation2], 4
      %s29 = int_to_ptr.vmem [resolvable:$true] %s28
      %34 = dma.hbm_to_vmem [thread:$0]  %s0, 512, %s29, [#allocation3], 256, 256, 16
    $region5: #{tpu_custom_call.1} parent=1 // pred_fallthru
      _
    // Predicated region
    $region6: #{tpu_custom_call.1} parent=1 // pred_check
      _
    $region7: #{tpu_custom_call.1} parent=1 // pred_check_branch
      %36 = sbr.rel (0) target = $region9
    $region8: #{tpu_custom_call.1} parent=1 // pred_region
      _
    $region9: #{tpu_custom_call.1} parent=1 // pred_fallthru
      _
    // Predicated region
    $region10: #{tpu_custom_call.1} parent=1 // pred_check
      _
    $region11: #{tpu_custom_call.1} parent=1 // pred_check_branch
      %38 = sbr.rel (0) target = $region13
    $region12: #{tpu_custom_call.1} parent=1 // pred_region
      %s40 = ssub.s32 16, 16
      %41 = vsyncadd [#allocation6], %s40
      %s43 = sshll.u32 [#allocation5], 4
      %s44 = int_to_ptr.vmem [resolvable:$true] %s43
      %46 = dma.hbm_to_vmem [thread:$0]  %s2, 16, %s44, [#allocation6]
    $region13: #{tpu_custom_call.1} parent=1 // pred_fallthru
      _
    // Predicated region
    $region14: #{tpu_custom_call.1} parent=1 // pred_check
      _
    $region15: #{tpu_custom_call.1} parent=1 // pred_check_branch
      %48 = sbr.rel (0) target = $region17
    $region16: #{tpu_custom_call.1} parent=1 // pred_region
      _
    $region17: #{tpu_custom_call.1} parent=1 // pred_fallthru
      _
    // Predicated region
    $region18: #{tpu_custom_call.1} parent=1 // pred_check
      _
    $region19: #{tpu_custom_call.1} parent=1 // pred_check_branch
      %50 = sbr.rel (0) target = $region21
    $region20: #{tpu_custom_call.1} parent=1 // pred_region
      %s52 = ssub.s32 16, 16
      %53 = vsyncadd [#allocation6], %s52
      %s55 = sshll.u32 [#allocation7], 4
      %s56 = int_to_ptr.vmem [resolvable:$true] %s55
      %58 = dma.hbm_to_vmem [thread:$0]  %s4, 16, %s56, [#allocation6]
    $region21: #{tpu_custom_call.1} parent=1 // pred_fallthru
      _
    // Predicated region
    $region22: #{tpu_custom_call.1} parent=1 // pred_check
      _
    $region23: #{tpu_custom_call.1} parent=1 // pred_check_branch
      %60 = sbr.rel (0) target = $region25
    $region24: #{tpu_custom_call.1} parent=1 // pred_region
      _
    $region25: #{tpu_custom_call.1} parent=1 // pred_fallthru
      _
    // Predicated region
    $region26: #{tpu_custom_call.1} parent=1 // pred_check
      _
    $region27: #{tpu_custom_call.1} parent=1 // pred_check_branch
      %62 = sbr.rel (0) target = $region29
    $region28: #{tpu_custom_call.1} parent=1 // pred_region
      %s64 = ssub.s32 16, 16
      %65 = vsyncadd [#allocation9], %s64
      %s67 = sshll.u32 [#allocation8], 4
      %s68 = int_to_ptr.vmem [resolvable:$true] %s67
      %70 = dma.hbm_to_vmem [thread:$0]  %s6, 16, %s68, [#allocation9]
    $region29: #{tpu_custom_call.1} parent=1 // pred_fallthru
      _
    // Predicated region
    $region30: #{tpu_custom_call.1} parent=1 // pred_check
      _
    $region31: #{tpu_custom_call.1} parent=1 // pred_check_branch
      %72 = sbr.rel (0) target = $region33
    $region32: #{tpu_custom_call.1} parent=1 // pred_region
      %s74 = ssub.s32 256, 256
      %75 = vsyncadd [#allocation9], %s74
      %s76 = sshll.u32 [#allocation10], 4
      %s77 = int_to_ptr.vmem [resolvable:$true] %s76
      %82 = dma.hbm_to_vmem [thread:$0]  %s7, 256, %s77, [#allocation9], 128, 128, 8
    $region33: #{tpu_custom_call.1} parent=1 // pred_fallthru
      _
    // Predicated region
    $region34: #{tpu_custom_call.1} parent=1 // pred_check
      _
    $region35: #{tpu_custom_call.1} parent=1 // pred_check_branch
      %84 = sbr.rel (0) target = $region37
    $region36: #{tpu_custom_call.1} parent=1 // pred_region
      %s86 = ssub.s32 16, 16
      %87 = vsyncadd [#allocation12], %s86
      %s89 = sshll.u32 [#allocation11], 4
      %s90 = int_to_ptr.vmem [resolvable:$true] %s89
      %92 = dma.hbm_to_vmem [thread:$0]  %s8, 16, %s90, [#allocation12]
    $region37: #{tpu_custom_call.1} parent=1 // pred_fallthru
      _
    // Predicated region
    $region38: #{tpu_custom_call.1} parent=1 // pred_check
      _
    $region39: #{tpu_custom_call.1} parent=1 // pred_check_branch
      %94 = sbr.rel (0) target = $region41
    $region40: #{tpu_custom_call.1} parent=1 // pred_region
      _
    $region41: #{tpu_custom_call.1} parent=1 // pred_fallthru
      _
    // Predicated region
    $region42: #{tpu_custom_call.1} parent=1 // pred_check
      _
    $region43: #{tpu_custom_call.1} parent=1 // pred_check_branch
      %96 = sbr.rel (0) target = $region45
    $region44: #{tpu_custom_call.1} parent=1 // pred_region
      _
    $region45: #{tpu_custom_call.1} parent=1 // pred_fallthru
      _
    // Predicated region
    $region46: #{tpu_custom_call.1} parent=1 // pred_check
      _
    $region47: #{tpu_custom_call.1} parent=1 // pred_check_branch
      %98 = sbr.rel (0) target = $region49
    $region48: #{tpu_custom_call.1} parent=1 // pred_region
      %s100 = ssub.s32 3072, 3072
      %101 = vsyncadd [#allocation12], %s100
      %s102 = sshll.u32 [#allocation13], 4
      %s103 = int_to_ptr.vmem [resolvable:$true] %s102
      %108 = dma.hbm_to_vmem [thread:$0]  %s11, 3072, %s103, [#allocation12], 256, 256, 16
    $region49: #{tpu_custom_call.1} parent=1 // pred_fallthru
      _
    // Predicated region
    $region50: #{tpu_custom_call.1} parent=1 // pred_check
      _
    $region51: #{tpu_custom_call.1} parent=1 // pred_check_branch
      %110 = sbr.rel (0) target = $region53
    $region52: #{tpu_custom_call.1} parent=1 // pred_region
      _
    $region53: #{tpu_custom_call.1} parent=1 // pred_fallthru
      _
    // Predicated region
    $region54: #{tpu_custom_call.1} parent=1 // pred_check
      _
    $region55: #{tpu_custom_call.1} parent=1 // pred_check_branch
      %112 = sbr.rel (0) target = $region57
    $region56: #{tpu_custom_call.1} parent=1 // pred_region
      %113 = dma.done [#allocation3], 512
    $region57: #{tpu_custom_call.1} parent=1 // pred_fallthru
      _
    // Predicated region
    $region58: #{tpu_custom_call.1} parent=1 // pred_check
      _
    $region59: #{tpu_custom_call.1} parent=1 // pred_check_branch
      %115 = sbr.rel (0) target = $region61
    $region60: #{tpu_custom_call.1} parent=1 // pred_region
      %116 = dma.done [#allocation6], 16
    $region61: #{tpu_custom_call.1} parent=1 // pred_fallthru
      _
    // Predicated region
    $region62: #{tpu_custom_call.1} parent=1 // pred_check
      _
    $region63: #{tpu_custom_call.1} parent=1 // pred_check_branch
      %118 = sbr.rel (0) target = $region65
    $region64: #{tpu_custom_call.1} parent=1 // pred_region
      %119 = dma.done [#allocation6], 16
    $region65: #{tpu_custom_call.1} parent=1 // pred_fallthru
      _
    // Predicated region
    $region66: #{tpu_custom_call.1} parent=1 // pred_check
      _
    $region67: #{tpu_custom_call.1} parent=1 // pred_check_branch
      %121 = sbr.rel (0) target = $region69
    $region68: #{tpu_custom_call.1} parent=1 // pred_region
      %122 = dma.done [#allocation9], 16
    $region69: #{tpu_custom_call.1} parent=1 // pred_fallthru
      _
    // Predicated region
    $region70: #{tpu_custom_call.1} parent=1 // pred_check
      _
    $region71: #{tpu_custom_call.1} parent=1 // pred_check_branch
      %124 = sbr.rel (0) target = $region73
    $region72: #{tpu_custom_call.1} parent=1 // pred_region
      %125 = dma.done [#allocation9], 256
    $region73: #{tpu_custom_call.1} parent=1 // pred_fallthru
      _
    // Predicated region
    $region74: #{tpu_custom_call.1} parent=1 // pred_check
      _
    $region75: #{tpu_custom_call.1} parent=1 // pred_check_branch
      %127 = sbr.rel (0) target = $region77
    $region76: #{tpu_custom_call.1} parent=1 // pred_region
      %128 = dma.done [#allocation12], 16
    $region77: #{tpu_custom_call.1} parent=1 // pred_fallthru
      _
    // Predicated region
    $region78: #{tpu_custom_call.1} parent=1 // pred_check
      _
    $region79: #{tpu_custom_call.1} parent=1 // pred_check_branch
      %130 = sbr.rel (0) target = $region81
    $region80: #{tpu_custom_call.1} parent=1 // pred_region
      %131 = dma.done [#allocation12], 3072
    $region81: #{tpu_custom_call.1} parent=1 // pred_fallthru
      _
    %v132 = vld [vmem:[#allocation2] sm:$0xff]
    %v133 = vld [vmem:[#allocation2 + $0x8] sm:$0xff]
    %v134 = vld [vmem:[#allocation2 + $0x10] sm:$0xff]
    %v135 = vld [vmem:[#allocation2 + $0x18] sm:$0xff]
    %v136 = vld [vmem:[%s1] sm:$0xff]
    %v137 = vld [vmem:[%s1 + $0x8] sm:$0xff]
    %v138 = vld [vmem:[%s1 + $0x10] sm:$0xff]
    %v139 = vld [vmem:[%s1 + $0x18] sm:$0xff]
    %v140 = vld [vmem:[%s1 + $0x20] sm:$0xff]
    %v141 = vld [vmem:[%s1 + $0x28] sm:$0xff]
    %v142 = vld [vmem:[%s1 + $0x30] sm:$0xff]
    %v143 = vld [vmem:[%s1 + $0x38] sm:$0xff]
    %v144 = vld [vmem:[%s1 + $0x40] sm:$0xff]
    %v145 = vld [vmem:[%s1 + $0x48] sm:$0xff]
    %v146 = vld [vmem:[%s1 + $0x50] sm:$0xff]
    %v147 = vld [vmem:[%s1 + $0x58] sm:$0xff]
    %v148 = vld [vmem:[%s1 + $0x60] sm:$0xff]
    %v149 = vld [vmem:[%s1 + $0x68] sm:$0xff]
    %v150 = vld [vmem:[%s1 + $0x70] sm:$0xff]
    %v151 = vld [vmem:[%s1 + $0x78] sm:$0xff]
    %v152 = vld [vmem:[%s1 + $0x80] sm:$0xff]
    %v153 = vld [vmem:[%s1 + $0x88] sm:$0xff]
    %v154 = vld [vmem:[%s1 + $0x90] sm:$0xff]
    %v155 = vld [vmem:[%s1 + $0x98] sm:$0xff]
    %v156 = vld [vmem:[%s1 + $0xa0] sm:$0xff]
    %v157 = vld [vmem:[%s1 + $0xa8] sm:$0xff]
    %v158 = vld [vmem:[%s1 + $0xb0] sm:$0xff]
    %v159 = vld [vmem:[%s1 + $0xb8] sm:$0xff]
    %v160 = vld [vmem:[#allocation5] sm:$0x1]
    %v162 = vlaneseq
    %v163 = vshrl.u32 %v162, 7
    %v164 = vsub.s32 0, %v163
    %v165 = vrot.slane %v160, %v164
    %vm167 = vcmask 523264
    %v169 = vsel %vm167, %v133, 0
    %v172 = vsel %vm167, %v135, 0
    %174 = vmatprep.subr.mxu0 0.0
    %175 = vmatpush1.msra.mxu0 %v136
    %176 = vmatprep.subr.mxu0 0.0
    %177 = vmatpush1.msra.mxu0 %v137
    %178 = vmatprep.subr.mxu0 0.0
    %179 = vmatpush1.msra.mxu0 %v138
    %180 = vmatprep.subr.mxu0 0.0
    %181 = vmatpush1.msra.mxu0 %v139
    %182 = vmatprep.subr.mxu0 0.0
    %183 = vmatpush1.msra.mxu0 %v140
    %184 = vmatprep.subr.mxu0 0.0
    %185 = vmatpush1.msra.mxu0 %v141
    %186 = vmatprep.subr.mxu0 0.0
    %187 = vmatpush1.msra.mxu0 %v142
    %188 = vmatprep.subr.mxu0 0.0
    %189 = vmatpush1.msra.mxu0 %v143
    %190 = vmatprep.subr.mxu0 0.0
    %191 = vmatpush1.msra.mxu0 %v144
    %192 = vmatprep.subr.mxu0 0.0
    %193 = vmatpush1.msra.mxu0 %v145
    %194 = vmatprep.subr.mxu0 0.0
    %195 = vmatpush1.msra.mxu0 %v146
    %196 = vmatprep.subr.mxu0 0.0
    %197 = vmatpush1.msra.mxu0 %v147
    %198 = vmatprep.subr.mxu0 0.0
    %199 = vmatpush1.msra.mxu0 %v148
    %200 = vmatprep.subr.mxu0 0.0
    %201 = vmatpush1.msra.mxu0 %v149
    %202 = vmatprep.subr.mxu0 0.0
    %203 = vmatpush1.msra.mxu0 %v150
    %204 = vmatprep.subr.mxu0 0.0
    %205 = vmatpush1.msra.mxu0 %v151
    %206 = vmatprep.subr.mxu0 0.0
    %207 = vmatpush1.msra.mxu0 %v152
    %208 = vmatprep.subr.mxu0 0.0
    %209 = vmatpush1.msra.mxu0 %v153
    %210 = vmatprep.subr.mxu0 0.0
    %211 = vmatpush1.msra.mxu0 %v154
    %212 = vmatprep.subr.mxu0 0.0
    %213 = vmatpush1.msra.mxu0 %v155
    %214 = vmatprep.subr.mxu0 0.0
    %215 = vmatpush1.msra.mxu0 %v156
    %216 = vmatprep.subr.mxu0 0.0
    %217 = vmatpush1.msra.mxu0 %v157
    %218 = vmatprep.subr.mxu0 0.0
    %219 = vmatpush1.msra.mxu0 %v158
    %220 = vmatprep.subr.mxu0 0.0
    %221 = vmatpush1.msra.mxu0 %v159
    %222 = vmatprep.subr.mxu0 0.0
    %223 = vmatpush1.msra.mxu0 0.0
    %224 = vmatprep.subr.mxu0 0.0
    %225 = vmatpush1.msra.mxu0 0.0
    %226 = vmatprep.subr.mxu0 0.0
    %227 = vmatpush1.msra.mxu0 0.0
    %228 = vmatprep.subr.mxu0 0.0
    %229 = vmatpush1.msra.mxu0 0.0
    %230 = vmatprep.subr.mxu0 0.0
    %231 = vmatpush1.msra.mxu0 0.0
    %232 = vmatprep.subr.mxu0 0.0
    %233 = vmatpush1.msra.mxu0 0.0
    %234 = vmatprep.subr.mxu0 0.0
    %235 = vmatpush1.msra.mxu0 0.0
    %236 = vmatprep.subr.mxu0 0.0
    %237 = vmatpush1.msra.mxu0 0.0
    %238 = vmatprep.mubr.f32.mxu0 %v169
    %239 = vmatmul.mubr.f32.gmra.mrb[0].mxu0 %v132
    %v240 = vpop.f32.mrb[0].mxu0
    %v241 = vadd.f32 %v165, %v240
    %v242 = vpop.f32.mrb[0].mxu0
    %243 = vmatprep.mubr.f32.mxu0 %v172
    %244 = vmatmul.mubr.f32.gmra.mrb[0].mxu0 %v134
    %v245 = vpop.f32.mrb[0].mxu0
    %v246 = vadd.f32 %v165, %v245
    %v247 = vpop.f32.mrb[0].mxu0
    %248 = vdwg.mxu0
    %v249 = vmax.f32 %v241, 0.0
    %v250 = vmax.f32 %v246, 0.0
    %v251 = vld [vmem:[%s3] sm:$0xff]
    %v252 = vld [vmem:[%s3 + $0x8] sm:$0xff]
    %v253 = vld [vmem:[%s3 + $0x10] sm:$0xff]
    %v254 = vld [vmem:[%s3 + $0x18] sm:$0xff]
    %v255 = vld [vmem:[%s3 + $0x20] sm:$0xff]
    %v256 = vld [vmem:[%s3 + $0x28] sm:$0xff]
    %v257 = vld [vmem:[%s3 + $0x30] sm:$0xff]
    %v258 = vld [vmem:[%s3 + $0x38] sm:$0xff]
    %v259 = vld [vmem:[%s3 + $0x40] sm:$0xff]
    %v260 = vld [vmem:[%s3 + $0x48] sm:$0xff]
    %v261 = vld [vmem:[%s3 + $0x50] sm:$0xff]
    %v262 = vld [vmem:[%s3 + $0x58] sm:$0xff]
    %v263 = vld [vmem:[#allocation7] sm:$0x1]
    %v265 = vlaneseq
    %v266 = vshrl.u32 %v265, 7
    %v267 = vsub.s32 0, %v266
    %v268 = vrot.slane %v263, %v267
    %vm270 = vcmask 785408
    %v272 = vsel %vm270, %v249, 0
    %v275 = vsel %vm270, %v250, 0
    %277 = vmatprep.subr.mxu0 0.0
    %278 = vmatpush1.msra.mxu0 %v251
    %279 = vmatprep.subr.mxu0 0.0
    %280 = vmatpush1.msra.mxu0 %v252
    %281 = vmatprep.subr.mxu0 0.0
    %282 = vmatpush1.msra.mxu0 %v253
    %283 = vmatprep.subr.mxu0 0.0
    %284 = vmatpush1.msra.mxu0 %v254
    %285 = vmatprep.subr.mxu0 0.0
    %286 = vmatpush1.msra.mxu0 %v255
    %287 = vmatprep.subr.mxu0 0.0
    %288 = vmatpush1.msra.mxu0 %v256
    %289 = vmatprep.subr.mxu0 0.0
    %290 = vmatpush1.msra.mxu0 %v257
    %291 = vmatprep.subr.mxu0 0.0
    %292 = vmatpush1.msra.mxu0 %v258
    %293 = vmatprep.subr.mxu0 0.0
    %294 = vmatpush1.msra.mxu0 %v259
    %295 = vmatprep.subr.mxu0 0.0
    %296 = vmatpush1.msra.mxu0 %v260
    %297 = vmatprep.subr.mxu0 0.0
    %298 = vmatpush1.msra.mxu0 %v261
    %299 = vmatprep.subr.mxu0 0.0
    %300 = vmatpush1.msra.mxu0 %v262
    %301 = vmatprep.subr.mxu0 0.0
    %302 = vmatpush1.msra.mxu0 0.0
    %303 = vmatprep.subr.mxu0 0.0
    %304 = vmatpush1.msra.mxu0 0.0
    %305 = vmatprep.subr.mxu0 0.0
    %306 = vmatpush1.msra.mxu0 0.0
    %307 = vmatprep.subr.mxu0 0.0
    %308 = vmatpush1.msra.mxu0 0.0
    %309 = vmatprep.subr.mxu0 0.0
    %310 = vmatpush1.msra.mxu0 0.0
    %311 = vmatprep.subr.mxu0 0.0
    %312 = vmatpush1.msra.mxu0 0.0
    %313 = vmatprep.subr.mxu0 0.0
    %314 = vmatpush1.msra.mxu0 0.0
    %315 = vmatprep.subr.mxu0 0.0
    %316 = vmatpush1.msra.mxu0 0.0
    %317 = vmatprep.subr.mxu0 0.0
    %318 = vmatpush1.msra.mxu0 0.0
    %319 = vmatprep.subr.mxu0 0.0
    %320 = vmatpush1.msra.mxu0 0.0
    %321 = vmatprep.subr.mxu0 0.0
    %322 = vmatpush1.msra.mxu0 0.0
    %323 = vmatprep.subr.mxu0 0.0
    %324 = vmatpush1.msra.mxu0 0.0
    %325 = vmatprep.subr.mxu0 0.0
    %326 = vmatpush1.msra.mxu0 0.0
    %327 = vmatprep.subr.mxu0 0.0
    %328 = vmatpush1.msra.mxu0 0.0
    %329 = vmatprep.subr.mxu0 0.0
    %330 = vmatpush1.msra.mxu0 0.0
    %331 = vmatprep.subr.mxu0 0.0
    %332 = vmatpush1.msra.mxu0 0.0
    %333 = vmatprep.subr.mxu0 0.0
    %334 = vmatpush1.msra.mxu0 0.0
    %335 = vmatprep.subr.mxu0 0.0
    %336 = vmatpush1.msra.mxu0 0.0
    %337 = vmatprep.subr.mxu0 0.0
    %338 = vmatpush1.msra.mxu0 0.0
    %339 = vmatprep.subr.mxu0 0.0
    %340 = vmatpush1.msra.mxu0 0.0
    %341 = vmatprep.mubr.f32.mxu0 0.0
    %342 = vmatmul.mubr.f32.gmra.mrb[0].mxu0 %v272
    %v343 = vpop.f32.mrb[0].mxu0
    %v344 = vadd.f32 %v268, %v343
    %v345 = vpop.f32.mrb[0].mxu0
    %346 = vmatprep.mubr.f32.mxu0 0.0
    %347 = vmatmul.mubr.f32.gmra.mrb[0].mxu0 %v275
    %v348 = vpop.f32.mrb[0].mxu0
    %v349 = vadd.f32 %v268, %v348
    %v350 = vpop.f32.mrb[0].mxu0
    %351 = vdwg.mxu0
    %v352 = vmax.f32 %v344, 0.0
    %v353 = vmax.f32 %v349, 0.0
    %v354 = vld [vmem:[%s5] sm:$0xff]
    %v355 = vld [vmem:[%s5 + $0x8] sm:$0xff]
    %v356 = vld [vmem:[%s5 + $0x10] sm:$0xff]
    %v357 = vld [vmem:[%s5 + $0x18] sm:$0xff]
    %v358 = vld [vmem:[%s5 + $0x20] sm:$0xff]
    %v359 = vld [vmem:[%s5 + $0x28] sm:$0xff]
    %v360 = vld [vmem:[#allocation8] sm:$0x1]
    %v362 = vlaneseq
    %v363 = vshrl.u32 %v362, 7
    %v364 = vsub.s32 0, %v363
    %v365 = vrot.slane %v360, %v364
    %vm367 = vcmask 392192
    %v369 = vsel %vm367, %v352, 0
    %v372 = vsel %vm367, %v353, 0
    %374 = vmatprep.subr.mxu0 0.0
    %375 = vmatpush1.msra.mxu0 %v354
    %376 = vmatprep.subr.mxu0 0.0
    %377 = vmatpush1.msra.mxu0 %v355
    %378 = vmatprep.subr.mxu0 0.0
    %379 = vmatpush1.msra.mxu0 %v356
    %380 = vmatprep.subr.mxu0 0.0
    %381 = vmatpush1.msra.mxu0 %v357
    %382 = vmatprep.subr.mxu0 0.0
    %383 = vmatpush1.msra.mxu0 %v358
    %384 = vmatprep.subr.mxu0 0.0
    %385 = vmatpush1.msra.mxu0 %v359
    %386 = vmatprep.subr.mxu0 0.0
    %387 = vmatpush1.msra.mxu0 0.0
    %388 = vmatprep.subr.mxu0 0.0
    %389 = vmatpush1.msra.mxu0 0.0
    %390 = vmatprep.subr.mxu0 0.0
    %391 = vmatpush1.msra.mxu0 0.0
    %392 = vmatprep.subr.mxu0 0.0
    %393 = vmatpush1.msra.mxu0 0.0
    %394 = vmatprep.subr.mxu0 0.0
    %395 = vmatpush1.msra.mxu0 0.0
    %396 = vmatprep.subr.mxu0 0.0
    %397 = vmatpush1.msra.mxu0 0.0
    %398 = vmatprep.subr.mxu0 0.0
    %399 = vmatpush1.msra.mxu0 0.0
    %400 = vmatprep.subr.mxu0 0.0
    %401 = vmatpush1.msra.mxu0 0.0
    %402 = vmatprep.subr.mxu0 0.0
    %403 = vmatpush1.msra.mxu0 0.0
    %404 = vmatprep.subr.mxu0 0.0
    %405 = vmatpush1.msra.mxu0 0.0
    %406 = vmatprep.subr.mxu0 0.0
    %407 = vmatpush1.msra.mxu0 0.0
    %408 = vmatprep.subr.mxu0 0.0
    %409 = vmatpush1.msra.mxu0 0.0
    %410 = vmatprep.subr.mxu0 0.0
    %411 = vmatpush1.msra.mxu0 0.0
    %412 = vmatprep.subr.mxu0 0.0
    %413 = vmatpush1.msra.mxu0 0.0
    %414 = vmatprep.subr.mxu0 0.0
    %415 = vmatpush1.msra.mxu0 0.0
    %416 = vmatprep.subr.mxu0 0.0
    %417 = vmatpush1.msra.mxu0 0.0
    %418 = vmatprep.subr.mxu0 0.0
    %419 = vmatpush1.msra.mxu0 0.0
    %420 = vmatprep.subr.mxu0 0.0
    %421 = vmatpush1.msra.mxu0 0.0
    %422 = vmatprep.subr.mxu0 0.0
    %423 = vmatpush1.msra.mxu0 0.0
    %424 = vmatprep.subr.mxu0 0.0
    %425 = vmatpush1.msra.mxu0 0.0
    %426 = vmatprep.subr.mxu0 0.0
    %427 = vmatpush1.msra.mxu0 0.0
    %428 = vmatprep.subr.mxu0 0.0
    %429 = vmatpush1.msra.mxu0 0.0
    %430 = vmatprep.subr.mxu0 0.0
    %431 = vmatpush1.msra.mxu0 0.0
    %432 = vmatprep.subr.mxu0 0.0
    %433 = vmatpush1.msra.mxu0 0.0
    %434 = vmatprep.subr.mxu0 0.0
    %435 = vmatpush1.msra.mxu0 0.0
    %436 = vmatprep.subr.mxu0 0.0
    %437 = vmatpush1.msra.mxu0 0.0
    %438 = vmatprep.mubr.f32.mxu0 0.0
    %439 = vmatmul.mubr.f32.gmra.mrb[0].mxu0 %v369
    %v440 = vpop.f32.mrb[0].mxu0
    %v441 = vadd.f32 %v365, %v440
    %v442 = vpop.f32.mrb[0].mxu0
    %443 = vmatprep.mubr.f32.mxu0 0.0
    %444 = vmatmul.mubr.f32.gmra.mrb[0].mxu0 %v372
    %v445 = vpop.f32.mrb[0].mxu0
    %v446 = vadd.f32 %v365, %v445
    %v447 = vpop.f32.mrb[0].mxu0
    %448 = vdwg.mxu0
    %v449 = vld [vmem:[#allocation10] sm:$0xff]
    %v450 = vld [vmem:[#allocation10 + $0x8] sm:$0xff]
    %v451 = vld [vmem:[#allocation11] sm:$0x1]
    %v453 = vlaneseq
    %v454 = vshrl.u32 %v453, 7
    %v455 = vsub.s32 0, %v454
    %v456 = vrot.slane %v451, %v455
    %vm458 = vcmask 130048
    %v460 = vsel %vm458, %v441, 0
    %v463 = vsel %vm458, %v446, 0
    %465 = vmatprep.subr.mxu0 0.0
    %466 = vmatpush1.msra.mxu0 %v449
    %467 = vmatprep.subr.mxu0 0.0
    %468 = vmatpush1.msra.mxu0 %v450
    %469 = vmatprep.subr.mxu0 0.0
    %470 = vmatpush1.msra.mxu0 0.0
    %471 = vmatprep.subr.mxu0 0.0
    %472 = vmatpush1.msra.mxu0 0.0
    %473 = vmatprep.subr.mxu0 0.0
    %474 = vmatpush1.msra.mxu0 0.0
    %475 = vmatprep.subr.mxu0 0.0
    %476 = vmatpush1.msra.mxu0 0.0
    %477 = vmatprep.subr.mxu0 0.0
    %478 = vmatpush1.msra.mxu0 0.0
    %479 = vmatprep.subr.mxu0 0.0
    %480 = vmatpush1.msra.mxu0 0.0
    %481 = vmatprep.subr.mxu0 0.0
    %482 = vmatpush1.msra.mxu0 0.0
    %483 = vmatprep.subr.mxu0 0.0
    %484 = vmatpush1.msra.mxu0 0.0
    %485 = vmatprep.subr.mxu0 0.0
    %486 = vmatpush1.msra.mxu0 0.0
    %487 = vmatprep.subr.mxu0 0.0
    %488 = vmatpush1.msra.mxu0 0.0
    %489 = vmatprep.subr.mxu0 0.0
    %490 = vmatpush1.msra.mxu0 0.0
    %491 = vmatprep.subr.mxu0 0.0
    %492 = vmatpush1.msra.mxu0 0.0
    %493 = vmatprep.subr.mxu0 0.0
    %494 = vmatpush1.msra.mxu0 0.0
    %495 = vmatprep.subr.mxu0 0.0
    %496 = vmatpush1.msra.mxu0 0.0
    %497 = vmatprep.subr.mxu0 0.0
    %498 = vmatpush1.msra.mxu0 0.0
    %499 = vmatprep.subr.mxu0 0.0
    %500 = vmatpush1.msra.mxu0 0.0
    %501 = vmatprep.subr.mxu0 0.0
    %502 = vmatpush1.msra.mxu0 0.0
    %503 = vmatprep.subr.mxu0 0.0
    %504 = vmatpush1.msra.mxu0 0.0
    %505 = vmatprep.subr.mxu0 0.0
    %506 = vmatpush1.msra.mxu0 0.0
    %507 = vmatprep.subr.mxu0 0.0
    %508 = vmatpush1.msra.mxu0 0.0
    %509 = vmatprep.subr.mxu0 0.0
    %510 = vmatpush1.msra.mxu0 0.0
    %511 = vmatprep.subr.mxu0 0.0
    %512 = vmatpush1.msra.mxu0 0.0
    %513 = vmatprep.subr.mxu0 0.0
    %514 = vmatpush1.msra.mxu0 0.0
    %515 = vmatprep.subr.mxu0 0.0
    %516 = vmatpush1.msra.mxu0 0.0
    %517 = vmatprep.subr.mxu0 0.0
    %518 = vmatpush1.msra.mxu0 0.0
    %519 = vmatprep.subr.mxu0 0.0
    %520 = vmatpush1.msra.mxu0 0.0
    %521 = vmatprep.subr.mxu0 0.0
    %522 = vmatpush1.msra.mxu0 0.0
    %523 = vmatprep.subr.mxu0 0.0
    %524 = vmatpush1.msra.mxu0 0.0
    %525 = vmatprep.subr.mxu0 0.0
    %526 = vmatpush1.msra.mxu0 0.0
    %527 = vmatprep.subr.mxu0 0.0
    %528 = vmatpush1.msra.mxu0 0.0
    %529 = vmatprep.mubr.f32.mxu0 0.0
    %530 = vmatmul.mubr.f32.gmra.mrb[0].mxu0 %v460
    %v531 = vpop.f32.mrb[0].mxu0
    %v532 = vadd.f32 %v456, %v531
    %v533 = vpop.f32.mrb[0].mxu0
    %534 = vmatprep.mubr.f32.mxu0 0.0
    %535 = vmatmul.mubr.f32.gmra.mrb[0].mxu0 %v463
    %v536 = vpop.f32.mrb[0].mxu0
    %v537 = vadd.f32 %v456, %v536
    %v538 = vpop.f32.mrb[0].mxu0
    %539 = vdwg.mxu0
    %v540 = vmax.f32 %v532, 0.0
    %v541 = vmax.f32 %v537, 0.0
    %v542 = vld [vmem:[%s9] sm:$0xff]
    %v543 = vld [vmem:[%s9 + $0x8] sm:$0xff]
    %v544 = vld [vmem:[%s9 + $0x10] sm:$0xff]
    %v545 = vld [vmem:[%s9 + $0x18] sm:$0xff]
    %v546 = vld [vmem:[%s9 + $0x20] sm:$0xff]
    %v547 = vld [vmem:[%s9 + $0x28] sm:$0xff]
    %v548 = vld [vmem:[%s10] sm:$0x1]
    %v550 = vlaneseq
    %v551 = vshrl.u32 %v550, 7
    %v552 = vsub.s32 0, %v551
    %v553 = vrot.slane %v548, %v552
    %v556 = vsel %vm367, %v540, 0
    %v559 = vsel %vm367, %v541, 0
    %561 = vmatprep.subr.mxu0 0.0
    %562 = vmatpush1.msra.mxu0 %v542
    %563 = vmatprep.subr.mxu0 0.0
    %564 = vmatpush1.msra.mxu0 %v543
    %565 = vmatprep.subr.mxu0 0.0
    %566 = vmatpush1.msra.mxu0 %v544
    %567 = vmatprep.subr.mxu0 0.0
    %568 = vmatpush1.msra.mxu0 %v545
    %569 = vmatprep.subr.mxu0 0.0
    %570 = vmatpush1.msra.mxu0 %v546
    %571 = vmatprep.subr.mxu0 0.0
    %572 = vmatpush1.msra.mxu0 %v547
    %573 = vmatprep.subr.mxu0 0.0
    %574 = vmatpush1.msra.mxu0 0.0
    %575 = vmatprep.subr.mxu0 0.0
    %576 = vmatpush1.msra.mxu0 0.0
    %577 = vmatprep.subr.mxu0 0.0
    %578 = vmatpush1.msra.mxu0 0.0
    %579 = vmatprep.subr.mxu0 0.0
    %580 = vmatpush1.msra.mxu0 0.0
    %581 = vmatprep.subr.mxu0 0.0
    %582 = vmatpush1.msra.mxu0 0.0
    %583 = vmatprep.subr.mxu0 0.0
    %584 = vmatpush1.msra.mxu0 0.0
    %585 = vmatprep.subr.mxu0 0.0
    %586 = vmatpush1.msra.mxu0 0.0
    %587 = vmatprep.subr.mxu0 0.0
    %588 = vmatpush1.msra.mxu0 0.0
    %589 = vmatprep.subr.mxu0 0.0
    %590 = vmatpush1.msra.mxu0 0.0
    %591 = vmatprep.subr.mxu0 0.0
    %592 = vmatpush1.msra.mxu0 0.0
    %593 = vmatprep.subr.mxu0 0.0
    %594 = vmatpush1.msra.mxu0 0.0
    %595 = vmatprep.subr.mxu0 0.0
    %596 = vmatpush1.msra.mxu0 0.0
    %597 = vmatprep.subr.mxu0 0.0
    %598 = vmatpush1.msra.mxu0 0.0
    %599 = vmatprep.subr.mxu0 0.0
    %600 = vmatpush1.msra.mxu0 0.0
    %601 = vmatprep.subr.mxu0 0.0
    %602 = vmatpush1.msra.mxu0 0.0
    %603 = vmatprep.subr.mxu0 0.0
    %604 = vmatpush1.msra.mxu0 0.0
    %605 = vmatprep.subr.mxu0 0.0
    %606 = vmatpush1.msra.mxu0 0.0
    %607 = vmatprep.subr.mxu0 0.0
    %608 = vmatpush1.msra.mxu0 0.0
    %609 = vmatprep.subr.mxu0 0.0
    %610 = vmatpush1.msra.mxu0 0.0
    %611 = vmatprep.subr.mxu0 0.0
    %612 = vmatpush1.msra.mxu0 0.0
    %613 = vmatprep.subr.mxu0 0.0
    %614 = vmatpush1.msra.mxu0 0.0
    %615 = vmatprep.subr.mxu0 0.0
    %616 = vmatpush1.msra.mxu0 0.0
    %617 = vmatprep.subr.mxu0 0.0
    %618 = vmatpush1.msra.mxu0 0.0
    %619 = vmatprep.subr.mxu0 0.0
    %620 = vmatpush1.msra.mxu0 0.0
    %621 = vmatprep.subr.mxu0 0.0
    %622 = vmatpush1.msra.mxu0 0.0
    %623 = vmatprep.subr.mxu0 0.0
    %624 = vmatpush1.msra.mxu0 0.0
    %625 = vmatprep.mubr.f32.mxu0 0.0
    %626 = vmatmul.mubr.f32.gmra.mrb[0].mxu0 %v556
    %v627 = vpop.f32.mrb[0].mxu0
    %v628 = vadd.f32 %v553, %v627
    %v629 = vpop.f32.mrb[0].mxu0
    %630 = vmatprep.mubr.f32.mxu0 0.0
    %631 = vmatmul.mubr.f32.gmra.mrb[0].mxu0 %v559
    %v632 = vpop.f32.mrb[0].mxu0
    %v633 = vadd.f32 %v553, %v632
    %v634 = vpop.f32.mrb[0].mxu0
    %635 = vdwg.mxu0
    %v636 = vmax.f32 %v628, 0.0
    %v637 = vmax.f32 %v633, 0.0
    %v638 = vld [vmem:[#allocation13] sm:$0xff]
    %v639 = vld [vmem:[#allocation13 + $0x8] sm:$0xff]
    %v640 = vld [vmem:[#allocation13 + $0x10] sm:$0xff]
    %v641 = vld [vmem:[#allocation13 + $0x18] sm:$0xff]
    %v642 = vld [vmem:[#allocation13 + $0x20] sm:$0xff]
    %v643 = vld [vmem:[#allocation13 + $0x28] sm:$0xff]
    %v644 = vld [vmem:[#allocation13 + $0x30] sm:$0xff]
    %v645 = vld [vmem:[#allocation13 + $0x38] sm:$0xff]
    %v646 = vld [vmem:[#allocation13 + $0x40] sm:$0xff]
    %v647 = vld [vmem:[#allocation13 + $0x48] sm:$0xff]
    %v648 = vld [vmem:[#allocation13 + $0x50] sm:$0xff]
    %v649 = vld [vmem:[#allocation13 + $0x58] sm:$0xff]
    %v650 = vld [vmem:[#allocation13 + $0x60] sm:$0xff]
    %v651 = vld [vmem:[#allocation13 + $0x68] sm:$0xff]
    %v652 = vld [vmem:[#allocation13 + $0x70] sm:$0xff]
    %v653 = vld [vmem:[#allocation13 + $0x78] sm:$0xff]
    %v654 = vld [vmem:[#allocation13 + $0x80] sm:$0xff]
    %v655 = vld [vmem:[#allocation13 + $0x88] sm:$0xff]
    %v656 = vld [vmem:[#allocation13 + $0x90] sm:$0xff]
    %v657 = vld [vmem:[#allocation13 + $0x98] sm:$0xff]
    %v658 = vld [vmem:[#allocation13 + $0xa0] sm:$0xff]
    %v659 = vld [vmem:[#allocation13 + $0xa8] sm:$0xff]
    %v660 = vld [vmem:[#allocation13 + $0xb0] sm:$0xff]
    %v661 = vld [vmem:[#allocation13 + $0xb8] sm:$0xff]
    %v662 = vld [vmem:[%s12] sm:$0x3]
    %v664 = vlaneseq
    %v665 = vshrl.u32 %v664, 7
    %v666 = vsub.s32 0, %v665
    %v667 = vrot.slane %v662, %v666
    %v668 = vlaneseq
    %v669 = vshrl.u32 %v668, 7
    %v670 = vsub.s32 1, %v669
    %v671 = vrot.slane %v662, %v670
    %v675 = vsel %vm270, %v636, 0
    %v678 = vsel %vm270, %v637, 0
    %680 = vmatprep.subr.mxu0 %v639
    %681 = vmatpush1.msra.mxu0 %v638
    %682 = vmatprep.subr.mxu0 %v641
    %683 = vmatpush1.msra.mxu0 %v640
    %684 = vmatprep.subr.mxu0 %v643
    %685 = vmatpush1.msra.mxu0 %v642
    %686 = vmatprep.subr.mxu0 %v645
    %687 = vmatpush1.msra.mxu0 %v644
    %688 = vmatprep.subr.mxu0 %v647
    %689 = vmatpush1.msra.mxu0 %v646
    %690 = vmatprep.subr.mxu0 %v649
    %691 = vmatpush1.msra.mxu0 %v648
    %692 = vmatprep.subr.mxu0 %v651
    %693 = vmatpush1.msra.mxu0 %v650
    %694 = vmatprep.subr.mxu0 %v653
    %695 = vmatpush1.msra.mxu0 %v652
    %696 = vmatprep.subr.mxu0 %v655
    %697 = vmatpush1.msra.mxu0 %v654
    %698 = vmatprep.subr.mxu0 %v657
    %699 = vmatpush1.msra.mxu0 %v656
    %700 = vmatprep.subr.mxu0 %v659
    %701 = vmatpush1.msra.mxu0 %v658
    %702 = vmatprep.subr.mxu0 %v661
    %703 = vmatpush1.msra.mxu0 %v660
    %704 = vmatprep.subr.mxu0 0.0
    %705 = vmatpush1.msra.mxu0 0.0
    %706 = vmatprep.subr.mxu0 0.0
    %707 = vmatpush1.msra.mxu0 0.0
    %708 = vmatprep.subr.mxu0 0.0
    %709 = vmatpush1.msra.mxu0 0.0
    %710 = vmatprep.subr.mxu0 0.0
    %711 = vmatpush1.msra.mxu0 0.0
    %712 = vmatprep.subr.mxu0 0.0
    %713 = vmatpush1.msra.mxu0 0.0
    %714 = vmatprep.subr.mxu0 0.0
    %715 = vmatpush1.msra.mxu0 0.0
    %716 = vmatprep.subr.mxu0 0.0
    %717 = vmatpush1.msra.mxu0 0.0
    %718 = vmatprep.subr.mxu0 0.0
    %719 = vmatpush1.msra.mxu0 0.0
    %720 = vmatprep.subr.mxu0 0.0
    %721 = vmatpush1.msra.mxu0 0.0
    %722 = vmatprep.subr.mxu0 0.0
    %723 = vmatpush1.msra.mxu0 0.0
    %724 = vmatprep.subr.mxu0 0.0
    %725 = vmatpush1.msra.mxu0 0.0
    %726 = vmatprep.subr.mxu0 0.0
    %727 = vmatpush1.msra.mxu0 0.0
    %728 = vmatprep.subr.mxu0 0.0
    %729 = vmatpush1.msra.mxu0 0.0
    %730 = vmatprep.subr.mxu0 0.0
    %731 = vmatpush1.msra.mxu0 0.0
    %732 = vmatprep.subr.mxu0 0.0
    %733 = vmatpush1.msra.mxu0 0.0
    %734 = vmatprep.subr.mxu0 0.0
    %735 = vmatpush1.msra.mxu0 0.0
    %736 = vmatprep.subr.mxu0 0.0
    %737 = vmatpush1.msra.mxu0 0.0
    %738 = vmatprep.subr.mxu0 0.0
    %739 = vmatpush1.msra.mxu0 0.0
    %740 = vmatprep.subr.mxu0 0.0
    %741 = vmatpush1.msra.mxu0 0.0
    %742 = vmatprep.subr.mxu0 0.0
    %743 = vmatpush1.msra.mxu0 0.0
    %744 = vmatprep.mubr.f32.mxu0 0.0
    %745 = vmatmul.mubr.f32.gmra.mrb[0].mxu0 %v675
    %v746 = vpop.f32.mrb[0].mxu0
    %v747 = vadd.f32 %v667, %v746
    %v748 = vpop.f32.mrb[0].mxu0
    %v749 = vadd.f32 %v671, %v748
    %750 = vmatprep.mubr.f32.mxu0 0.0
    %751 = vmatmul.mubr.f32.gmra.mrb[0].mxu0 %v678
    %v752 = vpop.f32.mrb[0].mxu0
    %v753 = vadd.f32 %v667, %v752
    %v754 = vpop.f32.mrb[0].mxu0
    %v755 = vadd.f32 %v671, %v754
    %756 = vdwg.mxu0
    %757 = vst [vmem:[#allocation14] sm:$0xff] %v747
    %758 = vst.msk [vmem:[#allocation14 + $0x8] sm:$0xff] %vm167, %v749
    %759 = vst [vmem:[#allocation14 + $0x10] sm:$0xff] %v753
    %760 = vst.msk [vmem:[#allocation14 + $0x18] sm:$0xff] %vm167, %v755
    // Predicated region
    $region82: #{tpu_custom_call.1} parent=1 // pred_check
      _
    $region83: #{tpu_custom_call.1} parent=1 // pred_check_branch
      %762 = sbr.rel (0) target = $region85
    $region84: #{tpu_custom_call.1} parent=1 // pred_region
      %s764 = ssub.s32 512, 512
      %765 = vsyncadd [#allocation4], %s764
      %s766 = sshll.u32 [#allocation14], 4
      %s767 = int_to_ptr.vmem [resolvable:$true] %s766
      %772 = dma.vmem_to_hbm [thread:$0]  %s767, 512, %s13, [#allocation4], 256, 256, 16
    $region85: #{tpu_custom_call.1} parent=1 // pred_fallthru
      _
    // Predicated region
    $region86: #{tpu_custom_call.1} parent=1 // pred_check
      _
    $region87: #{tpu_custom_call.1} parent=1 // pred_check_branch
      %774 = sbr.rel (0) target = $region89
    $region88: #{tpu_custom_call.1} parent=1 // pred_region
      %775 = dma.done [#allocation4], 512
    $region89: #{tpu_custom_call.1} parent=1 // pred_fallthru
      _
    %776 = vsyncpa [#allocation3], 1
    %777 = vsyncpa [#allocation6], 1
    %778 = vsyncpa [#allocation9], 1
    %779 = vsyncpa [#allocation12], 1
    %780 = vsyncpa [#allocation4], 1

</llo_original>
